<compile_context>
chip_gen: v6e
topology: v6e:2x2x1
jax: 0.10.0
libtpu: 0.0.40
codegen_flags: <defaults>
</compile_context>

<pallas_src>
import jax
import jax.numpy as jnp
from jax.experimental import pallas as pl
from jax.experimental.pallas import tpu as pltpu


def _normal_alignment_kernel(packed_ref, dir_ref, o_ref):
    # packed_ref: [4, TR, S]  components stacked as (nx, ny, nz, w)
    # dir_ref:    [TR, 3]
    # o_ref:      [TR, 1]
    nx = packed_ref[0].astype(jnp.float32)            # [TR, S]
    ny = packed_ref[1].astype(jnp.float32)
    nz = packed_ref[2].astype(jnp.float32)
    w = packed_ref[3].astype(jnp.float32)

    d = dir_ref[...].astype(jnp.float32)               # [TR, 3]
    dx = d[:, 0:1]                                      # [TR, 1] -> bcast over S
    dy = d[:, 1:2]
    dz = d[:, 2:3]

    dot = nx * dx + ny * dy + nz * dz                   # [TR, S]
    align = jnp.maximum(dot, 0.0)
    align = align * align                                # clamp(min=0) ** 2
    align = align * w                                    # * weights (detached)
    o_ref[...] = jnp.sum(align, axis=-1, keepdims=True).astype(o_ref.dtype)


def _pick_tile_rays(R, S, itemsize, vmem_budget_bytes=8 << 20):
    """Largest ray tile whose double-buffered packed slab fits the budget.

    Footprint per grid step ~= 2 (double buffer) * 4 (components) * TR * S * itemsize.
    Conservative budget keeps us well under the scoped-VMEM default on every
    generation (v5e/v6e: 128 MiB physical, v7x: 64 MiB physical / 32 MiB scoped).
    """
    cap = max(8, vmem_budget_bytes // (2 * 4 * S * itemsize))
    if R <= cap:
        return R                       # whole problem in one grid step
    # largest multiple-of-8 divisor of R not exceeding the cap
    tr = (cap // 8) * 8
    while tr >= 8:
        if R % tr == 0:
            return tr
        tr -= 8
    # no nice divisor: fall back to full extent (always legal, may be large)
    return R


def normal_alignment_renderer(normals, weights, directions, *, tile_rays=None):
    """normals: [R, S, 3], weights: [R, S, 1], directions: [R, 3] -> [R, 1]."""
    R, S, _ = normals.shape
    out_dtype = normals.dtype
    compute_dtype = normals.dtype

    if tile_rays is None:
        tile_rays = _pick_tile_rays(R, S, jnp.dtype(compute_dtype).itemsize)
    assert R % tile_rays == 0, "R must be divisible by tile_rays"

    # One-time pre-pass: pack (nx, ny, nz, w) into a single [4, R, S] slab so
    # the kernel reads one contiguous stream per grid step.
    normals_t = jnp.moveaxis(normals, -1, 0)                       # [3, R, S]
    weights_t = jnp.squeeze(weights, axis=-1)[None].astype(compute_dtype)  # [1, R, S]
    packed = jnp.concatenate([normals_t, weights_t], axis=0)        # [4, R, S]
    dirs = directions.astype(compute_dtype)                         # [R, 3]

    packed_spec = pl.BlockSpec((4, tile_rays, S), lambda i: (0, i, 0))
    dir_spec = pl.BlockSpec((tile_rays, 3), lambda i: (i, 0))
    out_spec = pl.BlockSpec((tile_rays, 1), lambda i: (i, 0))

    out = pl.pallas_call(
        _normal_alignment_kernel,
        out_shape=jax.ShapeDtypeStruct((R, 1), out_dtype),
        grid_spec=pltpu.PrefetchScalarGridSpec(
            num_scalar_prefetch=0,
            grid=(R // tile_rays,),
            in_specs=[packed_spec, dir_spec],
            out_specs=out_spec,
        ),
        compiler_params=pltpu.CompilerParams(
            dimension_semantics=("parallel",)),
    )(packed, dirs)
    return out


def _reference(normals, weights, directions):
    d = directions[..., None, :]                       # [R, 1, 3]
    a = jnp.clip(jnp.sum(normals * d, axis=-1), 0.0) ** 2
    a = a * jnp.squeeze(weights, axis=-1)
    return jnp.sum(a, axis=-1, keepdims=True)


if __name__ == "__main__":
    key = jax.random.PRNGKey(0)
    k1, k2, k3 = jax.random.split(key, 3)

    R, S = 128, 128                                   # rays, samples per ray
    normals = jax.random.normal(k1, (R, S, 3), dtype=jnp.float32)
    normals = normals / (jnp.linalg.norm(normals, axis=-1, keepdims=True) + 1e-6)
    weights = jax.nn.softmax(jax.random.normal(k2, (R, S, 1), dtype=jnp.float32), axis=1)
    directions = jax.random.normal(k3, (R, 3), dtype=jnp.float32)
    directions = directions / (jnp.linalg.norm(directions, axis=-1, keepdims=True) + 1e-6)

    ref = _reference(normals, weights, directions)

    # Auto tile: whole problem collapses to a single grid step.
    out = normal_alignment_renderer(normals, weights, directions)
    out = jax.block_until_ready(out)
    assert out.shape == (R, 1)
    assert jnp.allclose(out, ref, atol=1e-5, rtol=1e-5), "mismatch vs reference (auto tile)"

    # Explicit smaller tile: exercises the multi-step (pipelined) grid path.
    out_tiled = normal_alignment_renderer(normals, weights, directions, tile_rays=32)
    out_tiled = jax.block_until_ready(out_tiled)
    assert jnp.allclose(out_tiled, ref, atol=1e-5, rtol=1e-5), "mismatch vs reference (tiled)"

    print("KERNEL_OK")
</pallas_src>

<mosaic_0001>
module attributes {stable_mosaic.version = 11 : i64} {
  func.func @_normal_alignment_kernel(%arg0: i32, %arg1: memref<4x128x128xf32, #tpu.memory_space<vmem>>, %arg2: memref<128x3xf32, #tpu.memory_space<vmem>>, %arg3: memref<128x1xf32, #tpu.memory_space<vmem>>) attributes {dimension_semantics = [#tpu.dimension_semantics<parallel>], iteration_bounds = array<i64: 1>, scalar_prefetch = 0 : i64, scratch_operands = 0 : i64, tpu.core_type = #tpu.core_type<tc>, window_params = [{transform_indices = @transform_0, window_bounds = array<i64: 4, 128, 128>}, {transform_indices = @transform_1, window_bounds = array<i64: 128, 3>}, {transform_indices = @transform_2, window_bounds = array<i64: 128, 1>}]} {
    %c0 = arith.constant 0 : index
    %c0_0 = arith.constant 0 : index
    %c0_1 = arith.constant 0 : index
    %0 = vector.load %arg1[%c0, %c0_0, %c0_1] : memref<4x128x128xf32, #tpu.memory_space<vmem>>, vector<1x128x128xf32>
    %1 = vector.shape_cast %0 : vector<1x128x128xf32> to vector<128x128xf32>
    %c1 = arith.constant 1 : index
    %c0_2 = arith.constant 0 : index
    %c0_3 = arith.constant 0 : index
    %2 = vector.load %arg1[%c1, %c0_2, %c0_3] : memref<4x128x128xf32, #tpu.memory_space<vmem>>, vector<1x128x128xf32>
    %3 = vector.shape_cast %2 : vector<1x128x128xf32> to vector<128x128xf32>
    %c2 = arith.constant 2 : index
    %c0_4 = arith.constant 0 : index
    %c0_5 = arith.constant 0 : index
    %4 = vector.load %arg1[%c2, %c0_4, %c0_5] : memref<4x128x128xf32, #tpu.memory_space<vmem>>, vector<1x128x128xf32>
    %5 = vector.shape_cast %4 : vector<1x128x128xf32> to vector<128x128xf32>
    %c3 = arith.constant 3 : index
    %c0_6 = arith.constant 0 : index
    %c0_7 = arith.constant 0 : index
    %6 = vector.load %arg1[%c3, %c0_6, %c0_7] : memref<4x128x128xf32, #tpu.memory_space<vmem>>, vector<1x128x128xf32>
    %7 = vector.shape_cast %6 : vector<1x128x128xf32> to vector<128x128xf32>
    %c0_8 = arith.constant 0 : index
    %c0_9 = arith.constant 0 : index
    %8 = vector.load %arg2[%c0_8, %c0_9] : memref<128x3xf32, #tpu.memory_space<vmem>>, vector<128x3xf32>
    %9 = vector.extract_strided_slice %8 {offsets = [0, 0], sizes = [128, 1], strides = [1, 1]} : vector<128x3xf32> to vector<128x1xf32>
    %10 = vector.extract_strided_slice %8 {offsets = [0, 1], sizes = [128, 1], strides = [1, 1]} : vector<128x3xf32> to vector<128x1xf32>
    %11 = vector.extract_strided_slice %8 {offsets = [0, 2], sizes = [128, 1], strides = [1, 1]} : vector<128x3xf32> to vector<128x1xf32>
    %12 = vector.broadcast %9 : vector<128x1xf32> to vector<128x128xf32>
    %13 = arith.mulf %1, %12 : vector<128x128xf32>
    %14 = vector.broadcast %10 : vector<128x1xf32> to vector<128x128xf32>
    %15 = arith.mulf %3, %14 : vector<128x128xf32>
    %16 = arith.addf %13, %15 : vector<128x128xf32>
    %17 = vector.broadcast %11 : vector<128x1xf32> to vector<128x128xf32>
    %18 = arith.mulf %5, %17 : vector<128x128xf32>
    %19 = arith.addf %16, %18 : vector<128x128xf32>
    %cst = arith.constant 0.000000e+00 : f32
    %20 = vector.broadcast %cst : f32 to vector<128x128xf32>
    %21 = arith.maximumf %19, %20 : vector<128x128xf32>
    %22 = arith.mulf %21, %21 : vector<128x128xf32>
    %23 = arith.mulf %22, %7 : vector<128x128xf32>
    %cst_10 = arith.constant dense<0.000000e+00> : vector<128xf32>
    %24 = vector.multi_reduction <add>, %23, %cst_10 [1] : vector<128x128xf32> to vector<128xf32>
    %25 = vector.shape_cast %24 : vector<128xf32> to vector<128x1xf32>
    %c0_11 = arith.constant 0 : index
    %c0_12 = arith.constant 0 : index
    %26 = vector.load %arg3[%c0_11, %c0_12] : memref<128x1xf32, #tpu.memory_space<vmem>>, vector<128x1xf32>
    tpu.vector_store %arg3[%c0_11, %c0_12], %25 {strides = array<i32>} : memref<128x1xf32, #tpu.memory_space<vmem>>, vector<128x1xf32>,
    return
  }
  func.func @transform_0(%arg0: i32) -> (i32, i32, i32) {
    %c0_i32 = arith.constant 0 : i32
    %c0_i32_0 = arith.constant 0 : i32
    %c0_i32_1 = arith.constant 0 : i32
    return %c0_i32, %arg0, %c0_i32_0 : i32, i32, i32
  }
  func.func @transform_1(%arg0: i32) -> (i32, i32) {
    %c0_i32 = arith.constant 0 : i32
    %c0_i32_0 = arith.constant 0 : i32
    return %arg0, %c0_i32 : i32, i32
  }
  func.func @transform_2(%arg0: i32) -> (i32, i32) {
    %c0_i32 = arith.constant 0 : i32
    %c0_i32_0 = arith.constant 0 : i32
    return %arg0, %c0_i32 : i32, i32
  }
}

</mosaic_0001>

<llo_original>
// kernel: tpu_custom_call.1
$region0: #{tpu_custom_call.1}
  #allocation0 [shape = 'u32[]', space=smem, size = 0x4, offset = 0x4, fixed_abs, tag = 'smem constant byte address 0x4 - core index']
  #allocation1 [shape = 'u32[144,128]{1,0:T(1,128)}', space=vmem, size = 0x12000, scoped, tag = 'internal scratch']
  %s0 = inlined_call_operand.hbm [shape: f32[4,128,128], index: 0, kind: input, shape index: {}]
  %s1 = inlined_call_operand.vmem [shape: f32[128,3], index: 1, kind: input, shape index: {}]
  %s2 = inlined_call_operand.vmem [shape: f32[128,1], index: 2, kind: output, shape index: {}]
  %s3 = sld [smem:[#allocation0]]
  $region22: #{tpu_custom_call.1} parent=0
    _
  %s5 = ssub.s32 1, %s3
  %s6 = scalar_select 0, %s5, %s3
  $region1: #{tpu_custom_call.1} parent=0
    #allocation2 [shape = 'u8[262144]{0}', space=vmem, size = 0x40000, scoped, tag = 'input window, operand 0, single buffered']
    #allocation3 [shape = 's32[1]{0}', space=sflag, size = 0x4, scoped, tag = 'scoped memory for tpu_custom_call.1']
    %7 = vsyncpa [#allocation3], 0
    // Predicated region
    $region2: #{tpu_custom_call.1} parent=1 // pred_check
      _
    $region3: #{tpu_custom_call.1} parent=1 // pred_check_branch
      %9 = sbr.rel (0) target = $region5
    $region4: #{tpu_custom_call.1} parent=1 // pred_region
      %s11 = ssub.s32 8192, 8192
      %12 = vsyncadd [#allocation3], %s11
      %s13 = sshll.u32 [#allocation2], 4
      %s14 = int_to_ptr.vmem [resolvable:$true] %s13
      %19 = dma.hbm_to_vmem [thread:$0]  %s0, 8192, %s14, [#allocation3], 128, 128, 8
    $region5: #{tpu_custom_call.1} parent=1 // pred_fallthru
      _
    // Predicated region
    $region6: #{tpu_custom_call.1} parent=1 // pred_check
      _
    $region7: #{tpu_custom_call.1} parent=1 // pred_check_branch
      %21 = sbr.rel (0) target = $region9
    $region8: #{tpu_custom_call.1} parent=1 // pred_region
      _
    $region9: #{tpu_custom_call.1} parent=1 // pred_fallthru
      _
    // Predicated region
    $region10: #{tpu_custom_call.1} parent=1 // pred_check
      _
    $region11: #{tpu_custom_call.1} parent=1 // pred_check_branch
      %23 = sbr.rel (0) target = $region13
    $region12: #{tpu_custom_call.1} parent=1 // pred_region
      %24 = dma.done [#allocation3], 8192
    $region13: #{tpu_custom_call.1} parent=1 // pred_fallthru
      _
    %v25 = vld [vmem:[#allocation2] sm:$0xff]
    %v26 = vld [vmem:[#allocation2 + $0x8] sm:$0xff]
    %v27 = vld [vmem:[#allocation2 + $0x10] sm:$0xff]
    %v28 = vld [vmem:[#allocation2 + $0x18] sm:$0xff]
    %v29 = vld [vmem:[#allocation2 + $0x20] sm:$0xff]
    %v30 = vld [vmem:[#allocation2 + $0x28] sm:$0xff]
    %v31 = vld [vmem:[#allocation2 + $0x30] sm:$0xff]
    %v32 = vld [vmem:[#allocation2 + $0x38] sm:$0xff]
    %v33 = vld [vmem:[#allocation2 + $0x40] sm:$0xff]
    %v34 = vld [vmem:[#allocation2 + $0x48] sm:$0xff]
    %v35 = vld [vmem:[#allocation2 + $0x50] sm:$0xff]
    %v36 = vld [vmem:[#allocation2 + $0x58] sm:$0xff]
    %v37 = vld [vmem:[#allocation2 + $0x60] sm:$0xff]
    %v38 = vld [vmem:[#allocation2 + $0x68] sm:$0xff]
    %v39 = vld [vmem:[#allocation2 + $0x70] sm:$0xff]
    %v40 = vld [vmem:[#allocation2 + $0x78] sm:$0xff]
    %s41 = scalar_lea.vmem [#allocation2], 128
    %v42 = vld [vmem:[%s41] sm:$0xff]
    %v43 = vld [vmem:[%s41 + $0x8] sm:$0xff]
    %v44 = vld [vmem:[%s41 + $0x10] sm:$0xff]
    %v45 = vld [vmem:[%s41 + $0x18] sm:$0xff]
    %v46 = vld [vmem:[%s41 + $0x20] sm:$0xff]
    %v47 = vld [vmem:[%s41 + $0x28] sm:$0xff]
    %v48 = vld [vmem:[%s41 + $0x30] sm:$0xff]
    %v49 = vld [vmem:[%s41 + $0x38] sm:$0xff]
    %v50 = vld [vmem:[%s41 + $0x40] sm:$0xff]
    %v51 = vld [vmem:[%s41 + $0x48] sm:$0xff]
    %v52 = vld [vmem:[%s41 + $0x50] sm:$0xff]
    %v53 = vld [vmem:[%s41 + $0x58] sm:$0xff]
    %v54 = vld [vmem:[%s41 + $0x60] sm:$0xff]
    %v55 = vld [vmem:[%s41 + $0x68] sm:$0xff]
    %v56 = vld [vmem:[%s41 + $0x70] sm:$0xff]
    %v57 = vld [vmem:[%s41 + $0x78] sm:$0xff]
    %s58 = scalar_lea.vmem [#allocation2], 256
    %v59 = vld [vmem:[%s58] sm:$0xff]
    %v60 = vld [vmem:[%s58 + $0x8] sm:$0xff]
    %v61 = vld [vmem:[%s58 + $0x10] sm:$0xff]
    %v62 = vld [vmem:[%s58 + $0x18] sm:$0xff]
    %v63 = vld [vmem:[%s58 + $0x20] sm:$0xff]
    %v64 = vld [vmem:[%s58 + $0x28] sm:$0xff]
    %v65 = vld [vmem:[%s58 + $0x30] sm:$0xff]
    %v66 = vld [vmem:[%s58 + $0x38] sm:$0xff]
    %v67 = vld [vmem:[%s58 + $0x40] sm:$0xff]
    %v68 = vld [vmem:[%s58 + $0x48] sm:$0xff]
    %v69 = vld [vmem:[%s58 + $0x50] sm:$0xff]
    %v70 = vld [vmem:[%s58 + $0x58] sm:$0xff]
    %v71 = vld [vmem:[%s58 + $0x60] sm:$0xff]
    %v72 = vld [vmem:[%s58 + $0x68] sm:$0xff]
    %v73 = vld [vmem:[%s58 + $0x70] sm:$0xff]
    %v74 = vld [vmem:[%s58 + $0x78] sm:$0xff]
    %s75 = scalar_lea.vmem [#allocation2], 384
    %v76 = vld [vmem:[%s75] sm:$0xff]
    %v77 = vld [vmem:[%s75 + $0x8] sm:$0xff]
    %v78 = vld [vmem:[%s75 + $0x10] sm:$0xff]
    %v79 = vld [vmem:[%s75 + $0x18] sm:$0xff]
    %v80 = vld [vmem:[%s75 + $0x20] sm:$0xff]
    %v81 = vld [vmem:[%s75 + $0x28] sm:$0xff]
    %v82 = vld [vmem:[%s75 + $0x30] sm:$0xff]
    %v83 = vld [vmem:[%s75 + $0x38] sm:$0xff]
    %v84 = vld [vmem:[%s75 + $0x40] sm:$0xff]
    %v85 = vld [vmem:[%s75 + $0x48] sm:$0xff]
    %v86 = vld [vmem:[%s75 + $0x50] sm:$0xff]
    %v87 = vld [vmem:[%s75 + $0x58] sm:$0xff]
    %v88 = vld [vmem:[%s75 + $0x60] sm:$0xff]
    %v89 = vld [vmem:[%s75 + $0x68] sm:$0xff]
    %v90 = vld [vmem:[%s75 + $0x70] sm:$0xff]
    %v91 = vld [vmem:[%s75 + $0x78] sm:$0xff]
    %v92 = vld [vmem:[%s1] sm:$0xff]
    %v93 = vld [vmem:[%s1 + $0x8] sm:$0xff]
    %v94 = vld [vmem:[%s1 + $0x10] sm:$0xff]
    %v95 = vld [vmem:[%s1 + $0x18] sm:$0xff]
    %v96 = vld [vmem:[%s1 + $0x20] sm:$0xff]
    %v97 = vld [vmem:[%s1 + $0x28] sm:$0xff]
    %v98 = vld [vmem:[%s1 + $0x30] sm:$0xff]
    %v99 = vld [vmem:[%s1 + $0x38] sm:$0xff]
    %v100 = vld [vmem:[%s1 + $0x40] sm:$0xff]
    %v101 = vld [vmem:[%s1 + $0x48] sm:$0xff]
    %v102 = vld [vmem:[%s1 + $0x50] sm:$0xff]
    %v103 = vld [vmem:[%s1 + $0x58] sm:$0xff]
    %v104 = vld [vmem:[%s1 + $0x60] sm:$0xff]
    %v105 = vld [vmem:[%s1 + $0x68] sm:$0xff]
    %v106 = vld [vmem:[%s1 + $0x70] sm:$0xff]
    %v107 = vld [vmem:[%s1 + $0x78] sm:$0xff]
    %109 = vset.pattern.permute.xlu0 0
    %110 = vperm.xlu0 %109, %v92
    %v111 = vpop.permute.xlu0 %110
    %114 = vset.pattern.permute.xlu0 0
    %115 = vperm.xlu0 %114, %v93
    %v116 = vpop.permute.xlu0 %115
    %119 = vset.pattern.permute.xlu0 0
    %120 = vperm.xlu0 %119, %v94
    %v121 = vpop.permute.xlu0 %120
    %124 = vset.pattern.permute.xlu0 0
    %125 = vperm.xlu0 %124, %v95
    %v126 = vpop.permute.xlu0 %125
    %129 = vset.pattern.permute.xlu0 0
    %130 = vperm.xlu0 %129, %v96
    %v131 = vpop.permute.xlu0 %130
    %134 = vset.pattern.permute.xlu0 0
    %135 = vperm.xlu0 %134, %v97
    %v136 = vpop.permute.xlu0 %135
    %139 = vset.pattern.permute.xlu0 0
    %140 = vperm.xlu0 %139, %v98
    %v141 = vpop.permute.xlu0 %140
    %144 = vset.pattern.permute.xlu0 0
    %145 = vperm.xlu0 %144, %v99
    %v146 = vpop.permute.xlu0 %145
    %149 = vset.pattern.permute.xlu0 0
    %150 = vperm.xlu0 %149, %v100
    %v151 = vpop.permute.xlu0 %150
    %154 = vset.pattern.permute.xlu0 0
    %155 = vperm.xlu0 %154, %v101
    %v156 = vpop.permute.xlu0 %155
    %159 = vset.pattern.permute.xlu0 0
    %160 = vperm.xlu0 %159, %v102
    %v161 = vpop.permute.xlu0 %160
    %164 = vset.pattern.permute.xlu0 0
    %165 = vperm.xlu0 %164, %v103
    %v166 = vpop.permute.xlu0 %165
    %169 = vset.pattern.permute.xlu0 0
    %170 = vperm.xlu0 %169, %v104
    %v171 = vpop.permute.xlu0 %170
    %174 = vset.pattern.permute.xlu0 0
    %175 = vperm.xlu0 %174, %v105
    %v176 = vpop.permute.xlu0 %175
    %179 = vset.pattern.permute.xlu0 0
    %180 = vperm.xlu0 %179, %v106
    %v181 = vpop.permute.xlu0 %180
    %184 = vset.pattern.permute.xlu0 0
    %185 = vperm.xlu0 %184, %v107
    %v186 = vpop.permute.xlu0 %185
    %v188 = vmul.f32 %v25, %v111
    %v189 = vmul.f32 %v26, %v116
    %v190 = vmul.f32 %v27, %v121
    %v191 = vmul.f32 %v28, %v126
    %v192 = vmul.f32 %v29, %v131
    %v193 = vmul.f32 %v30, %v136
    %v194 = vmul.f32 %v31, %v141
    %v195 = vmul.f32 %v32, %v146
    %v196 = vmul.f32 %v33, %v151
    %v197 = vmul.f32 %v34, %v156
    %v198 = vmul.f32 %v35, %v161
    %v199 = vmul.f32 %v36, %v166
    %v200 = vmul.f32 %v37, %v171
    %v201 = vmul.f32 %v38, %v176
    %v202 = vmul.f32 %v39, %v181
    %v203 = vmul.f32 %v40, %v186
    %204 = vset.pattern.permute.xlu0 1
    %205 = vperm.xlu0 %204, %v92
    %v206 = vpop.permute.xlu0 %205
    %208 = vset.pattern.permute.xlu0 1
    %209 = vperm.xlu0 %208, %v93
    %v210 = vpop.permute.xlu0 %209
    %212 = vset.pattern.permute.xlu0 1
    %213 = vperm.xlu0 %212, %v94
    %v214 = vpop.permute.xlu0 %213
    %216 = vset.pattern.permute.xlu0 1
    %217 = vperm.xlu0 %216, %v95
    %v218 = vpop.permute.xlu0 %217
    %220 = vset.pattern.permute.xlu0 1
    %221 = vperm.xlu0 %220, %v96
    %v222 = vpop.permute.xlu0 %221
    %224 = vset.pattern.permute.xlu0 1
    %225 = vperm.xlu0 %224, %v97
    %v226 = vpop.permute.xlu0 %225
    %228 = vset.pattern.permute.xlu0 1
    %229 = vperm.xlu0 %228, %v98
    %v230 = vpop.permute.xlu0 %229
    %232 = vset.pattern.permute.xlu0 1
    %233 = vperm.xlu0 %232, %v99
    %v234 = vpop.permute.xlu0 %233
    %236 = vset.pattern.permute.xlu0 1
    %237 = vperm.xlu0 %236, %v100
    %v238 = vpop.permute.xlu0 %237
    %240 = vset.pattern.permute.xlu0 1
    %241 = vperm.xlu0 %240, %v101
    %v242 = vpop.permute.xlu0 %241
    %244 = vset.pattern.permute.xlu0 1
    %245 = vperm.xlu0 %244, %v102
    %v246 = vpop.permute.xlu0 %245
    %248 = vset.pattern.permute.xlu0 1
    %249 = vperm.xlu0 %248, %v103
    %v250 = vpop.permute.xlu0 %249
    %252 = vset.pattern.permute.xlu0 1
    %253 = vperm.xlu0 %252, %v104
    %v254 = vpop.permute.xlu0 %253
    %256 = vset.pattern.permute.xlu0 1
    %257 = vperm.xlu0 %256, %v105
    %v258 = vpop.permute.xlu0 %257
    %260 = vset.pattern.permute.xlu0 1
    %261 = vperm.xlu0 %260, %v106
    %v262 = vpop.permute.xlu0 %261
    %264 = vset.pattern.permute.xlu0 1
    %265 = vperm.xlu0 %264, %v107
    %v266 = vpop.permute.xlu0 %265
    %v268 = vmul.f32 %v42, %v206
    %v269 = vmul.f32 %v43, %v210
    %v270 = vmul.f32 %v44, %v214
    %v271 = vmul.f32 %v45, %v218
    %v272 = vmul.f32 %v46, %v222
    %v273 = vmul.f32 %v47, %v226
    %v274 = vmul.f32 %v48, %v230
    %v275 = vmul.f32 %v49, %v234
    %v276 = vmul.f32 %v50, %v238
    %v277 = vmul.f32 %v51, %v242
    %v278 = vmul.f32 %v52, %v246
    %v279 = vmul.f32 %v53, %v250
    %v280 = vmul.f32 %v54, %v254
    %v281 = vmul.f32 %v55, %v258
    %v282 = vmul.f32 %v56, %v262
    %v283 = vmul.f32 %v57, %v266
    %v284 = vadd.f32 %v188, %v268
    %v285 = vadd.f32 %v189, %v269
    %v286 = vadd.f32 %v190, %v270
    %v287 = vadd.f32 %v191, %v271
    %v288 = vadd.f32 %v192, %v272
    %v289 = vadd.f32 %v193, %v273
    %v290 = vadd.f32 %v194, %v274
    %v291 = vadd.f32 %v195, %v275
    %v292 = vadd.f32 %v196, %v276
    %v293 = vadd.f32 %v197, %v277
    %v294 = vadd.f32 %v198, %v278
    %v295 = vadd.f32 %v199, %v279
    %v296 = vadd.f32 %v200, %v280
    %v297 = vadd.f32 %v201, %v281
    %v298 = vadd.f32 %v202, %v282
    %v299 = vadd.f32 %v203, %v283
    %300 = vset.pattern.permute.xlu0 2
    %301 = vperm.xlu0 %300, %v92
    %v302 = vpop.permute.xlu0 %301
    %304 = vset.pattern.permute.xlu0 2
    %305 = vperm.xlu0 %304, %v93
    %v306 = vpop.permute.xlu0 %305
    %308 = vset.pattern.permute.xlu0 2
    %309 = vperm.xlu0 %308, %v94
    %v310 = vpop.permute.xlu0 %309
    %312 = vset.pattern.permute.xlu0 2
    %313 = vperm.xlu0 %312, %v95
    %v314 = vpop.permute.xlu0 %313
    %316 = vset.pattern.permute.xlu0 2
    %317 = vperm.xlu0 %316, %v96
    %v318 = vpop.permute.xlu0 %317
    %320 = vset.pattern.permute.xlu0 2
    %321 = vperm.xlu0 %320, %v97
    %v322 = vpop.permute.xlu0 %321
    %324 = vset.pattern.permute.xlu0 2
    %325 = vperm.xlu0 %324, %v98
    %v326 = vpop.permute.xlu0 %325
    %328 = vset.pattern.permute.xlu0 2
    %329 = vperm.xlu0 %328, %v99
    %v330 = vpop.permute.xlu0 %329
    %332 = vset.pattern.permute.xlu0 2
    %333 = vperm.xlu0 %332, %v100
    %v334 = vpop.permute.xlu0 %333
    %336 = vset.pattern.permute.xlu0 2
    %337 = vperm.xlu0 %336, %v101
    %v338 = vpop.permute.xlu0 %337
    %340 = vset.pattern.permute.xlu0 2
    %341 = vperm.xlu0 %340, %v102
    %v342 = vpop.permute.xlu0 %341
    %344 = vset.pattern.permute.xlu0 2
    %345 = vperm.xlu0 %344, %v103
    %v346 = vpop.permute.xlu0 %345
    %348 = vset.pattern.permute.xlu0 2
    %349 = vperm.xlu0 %348, %v104
    %v350 = vpop.permute.xlu0 %349
    %352 = vset.pattern.permute.xlu0 2
    %353 = vperm.xlu0 %352, %v105
    %v354 = vpop.permute.xlu0 %353
    %356 = vset.pattern.permute.xlu0 2
    %357 = vperm.xlu0 %356, %v106
    %v358 = vpop.permute.xlu0 %357
    %360 = vset.pattern.permute.xlu0 2
    %361 = vperm.xlu0 %360, %v107
    %v362 = vpop.permute.xlu0 %361
    %v364 = vmul.f32 %v59, %v302
    %v365 = vmul.f32 %v60, %v306
    %v366 = vmul.f32 %v61, %v310
    %v367 = vmul.f32 %v62, %v314
    %v368 = vmul.f32 %v63, %v318
    %v369 = vmul.f32 %v64, %v322
    %v370 = vmul.f32 %v65, %v326
    %v371 = vmul.f32 %v66, %v330
    %v372 = vmul.f32 %v67, %v334
    %v373 = vmul.f32 %v68, %v338
    %v374 = vmul.f32 %v69, %v342
    %v375 = vmul.f32 %v70, %v346
    %v376 = vmul.f32 %v71, %v350
    %v377 = vmul.f32 %v72, %v354
    %v378 = vmul.f32 %v73, %v358
    %v379 = vmul.f32 %v74, %v362
    %v380 = vadd.f32 %v284, %v364
    %v381 = vadd.f32 %v285, %v365
    %v382 = vadd.f32 %v286, %v366
    %v383 = vadd.f32 %v287, %v367
    %v384 = vadd.f32 %v288, %v368
    %v385 = vadd.f32 %v289, %v369
    %v386 = vadd.f32 %v290, %v370
    %v387 = vadd.f32 %v291, %v371
    %v388 = vadd.f32 %v292, %v372
    %v389 = vadd.f32 %v293, %v373
    %v390 = vadd.f32 %v294, %v374
    %v391 = vadd.f32 %v295, %v375
    %v392 = vadd.f32 %v296, %v376
    %v393 = vadd.f32 %v297, %v377
    %v394 = vadd.f32 %v298, %v378
    %v395 = vadd.f32 %v299, %v379
    %v396 = vmax.f32 %v380, 0.0
    %v397 = vmax.f32 %v381, 0.0
    %v398 = vmax.f32 %v382, 0.0
    %v399 = vmax.f32 %v383, 0.0
    %v400 = vmax.f32 %v384, 0.0
    %v401 = vmax.f32 %v385, 0.0
    %v402 = vmax.f32 %v386, 0.0
    %v403 = vmax.f32 %v387, 0.0
    %v404 = vmax.f32 %v388, 0.0
    %v405 = vmax.f32 %v389, 0.0
    %v406 = vmax.f32 %v390, 0.0
    %v407 = vmax.f32 %v391, 0.0
    %v408 = vmax.f32 %v392, 0.0
    %v409 = vmax.f32 %v393, 0.0
    %v410 = vmax.f32 %v394, 0.0
    %v411 = vmax.f32 %v395, 0.0
    %v412 = vmul.f32 %v396, %v396
    %v413 = vmul.f32 %v397, %v397
    %v414 = vmul.f32 %v398, %v398
    %v415 = vmul.f32 %v399, %v399
    %v416 = vmul.f32 %v400, %v400
    %v417 = vmul.f32 %v401, %v401
    %v418 = vmul.f32 %v402, %v402
    %v419 = vmul.f32 %v403, %v403
    %v420 = vmul.f32 %v404, %v404
    %v421 = vmul.f32 %v405, %v405
    %v422 = vmul.f32 %v406, %v406
    %v423 = vmul.f32 %v407, %v407
    %v424 = vmul.f32 %v408, %v408
    %v425 = vmul.f32 %v409, %v409
    %v426 = vmul.f32 %v410, %v410
    %v427 = vmul.f32 %v411, %v411
    %v428 = vmul.f32 %v412, %v76
    %v429 = vmul.f32 %v413, %v77
    %v430 = vmul.f32 %v414, %v78
    %v431 = vmul.f32 %v415, %v79
    %v432 = vmul.f32 %v416, %v80
    %v433 = vmul.f32 %v417, %v81
    %v434 = vmul.f32 %v418, %v82
    %v435 = vmul.f32 %v419, %v83
    %v436 = vmul.f32 %v420, %v84
    %v437 = vmul.f32 %v421, %v85
    %v438 = vmul.f32 %v422, %v86
    %v439 = vmul.f32 %v423, %v87
    %v440 = vmul.f32 %v424, %v88
    %v441 = vmul.f32 %v425, %v89
    %v442 = vmul.f32 %v426, %v90
    %v443 = vmul.f32 %v427, %v91
    %444 = vadd.xlane.f32.xlu0 %v428
    %v445 = vpop.xlane.xlu0 %444
    %446 = vadd.xlane.f32.xlu0 %v429
    %v447 = vpop.xlane.xlu0 %446
    %448 = vadd.xlane.f32.xlu0 %v430
    %v449 = vpop.xlane.xlu0 %448
    %450 = vadd.xlane.f32.xlu0 %v431
    %v451 = vpop.xlane.xlu0 %450
    %452 = vadd.xlane.f32.xlu0 %v432
    %v453 = vpop.xlane.xlu0 %452
    %454 = vadd.xlane.f32.xlu0 %v433
    %v455 = vpop.xlane.xlu0 %454
    %456 = vadd.xlane.f32.xlu0 %v434
    %v457 = vpop.xlane.xlu0 %456
    %458 = vadd.xlane.f32.xlu0 %v435
    %v459 = vpop.xlane.xlu0 %458
    %460 = vadd.xlane.f32.xlu0 %v436
    %v461 = vpop.xlane.xlu0 %460
    %462 = vadd.xlane.f32.xlu0 %v437
    %v463 = vpop.xlane.xlu0 %462
    %464 = vadd.xlane.f32.xlu0 %v438
    %v465 = vpop.xlane.xlu0 %464
    %466 = vadd.xlane.f32.xlu0 %v439
    %v467 = vpop.xlane.xlu0 %466
    %468 = vadd.xlane.f32.xlu0 %v440
    %v469 = vpop.xlane.xlu0 %468
    %470 = vadd.xlane.f32.xlu0 %v441
    %v471 = vpop.xlane.xlu0 %470
    %472 = vadd.xlane.f32.xlu0 %v442
    %v473 = vpop.xlane.xlu0 %472
    %474 = vadd.xlane.f32.xlu0 %v443
    %v475 = vpop.xlane.xlu0 %474
    %vm476 = vcmask 7168
    %477 = vst.msk [vmem:[%s2] sm:$0xff] %vm476, %v445
    %478 = vst.msk [vmem:[%s2 + $0x8] sm:$0xff] %vm476, %v447
    %479 = vst.msk [vmem:[%s2 + $0x10] sm:$0xff] %vm476, %v449
    %480 = vst.msk [vmem:[%s2 + $0x18] sm:$0xff] %vm476, %v451
    %481 = vst.msk [vmem:[%s2 + $0x20] sm:$0xff] %vm476, %v453
    %482 = vst.msk [vmem:[%s2 + $0x28] sm:$0xff] %vm476, %v455
    %483 = vst.msk [vmem:[%s2 + $0x30] sm:$0xff] %vm476, %v457
    %484 = vst.msk [vmem:[%s2 + $0x38] sm:$0xff] %vm476, %v459
    %485 = vst.msk [vmem:[%s2 + $0x40] sm:$0xff] %vm476, %v461
    %486 = vst.msk [vmem:[%s2 + $0x48] sm:$0xff] %vm476, %v463
    %487 = vst.msk [vmem:[%s2 + $0x50] sm:$0xff] %vm476, %v465
    %488 = vst.msk [vmem:[%s2 + $0x58] sm:$0xff] %vm476, %v467
    %489 = vst.msk [vmem:[%s2 + $0x60] sm:$0xff] %vm476, %v469
    %490 = vst.msk [vmem:[%s2 + $0x68] sm:$0xff] %vm476, %v471
    %491 = vst.msk [vmem:[%s2 + $0x70] sm:$0xff] %vm476, %v473
    %492 = vst.msk [vmem:[%s2 + $0x78] sm:$0xff] %vm476, %v475
    // Predicated region
    $region14: #{tpu_custom_call.1} parent=1 // pred_check
      _
    $region15: #{tpu_custom_call.1} parent=1 // pred_check_branch
      %494 = sbr.rel (0) target = $region17
    $region16: #{tpu_custom_call.1} parent=1 // pred_region
      _
    $region17: #{tpu_custom_call.1} parent=1 // pred_fallthru
      _
    // Predicated region
    $region18: #{tpu_custom_call.1} parent=1 // pred_check
      _
    $region19: #{tpu_custom_call.1} parent=1 // pred_check_branch
      %496 = sbr.rel (0) target = $region21
    $region20: #{tpu_custom_call.1} parent=1 // pred_region
      _
    $region21: #{tpu_custom_call.1} parent=1 // pred_fallthru
      _
    %497 = vsyncpa [#allocation3], 1

</llo_original>
